<compile_context>
chip_gen: v5e
topology: v5e:2x2
jax: 0.10.0
libtpu: 0.0.40
codegen_flags: <defaults>
</compile_context>

<pallas_src>
import jax
import jax.numpy as jnp
from jax.experimental import pallas as pl
from jax.experimental.pallas import tpu as pltpu


# ----------------------------------------------------------------------------
# geometry helpers
# ----------------------------------------------------------------------------
def _ceil_pool_out_size(in_size: int, k: int, s: int) -> int:
    # PyTorch ceil_mode output size (no padding):
    #   out = ceil((in - k) / s) + 1, constrained so the last window starts
    #   inside the input.
    out = -(-(in_size - k) // s) + 1
    if (out - 1) * s >= in_size:
        out -= 1
    return out


def _round_up(x: int, m: int) -> int:
    return ((x + m - 1) // m) * m


# ----------------------------------------------------------------------------
# Pallas kernel (lane-dense layout)
# ----------------------------------------------------------------------------
def _make_maxpool_kernel(H, W, k, s, OH, OW):
    """Kernel over a (H*W, TILE) slab: channels on lanes, pixels on sublanes.

    Each output row (oh, ow) is an elementwise VPU maximum-tree over the
    valid input rows of its window.  Partial boundary windows (ceil_mode)
    simply reduce over fewer rows -- no padding value ever participates,
    which matches PyTorch semantics exactly.  With stride == kernel_size the
    windows do not overlap, so every input row is loaded at most once.
    """
    def kernel(x_ref, o_ref):
        for oh in range(OH):
            h0, h1 = oh * s, min(oh * s + k, H)
            for ow in range(OW):
                w0, w1 = ow * s, min(ow * s + k, W)
                acc = None
                for h in range(h0, h1):
                    for w in range(w0, w1):
                        r = h * W + w
                        row = x_ref[r:r + 1, :]            # (1, TILE) lane-dense
                        acc = row if acc is None else jnp.maximum(acc, row)
                o = oh * OW + ow
                o_ref[o:o + 1, :] = acc                    # unmasked lane-dense store
    return kernel


# ----------------------------------------------------------------------------
# Pure-JAX (fused XLA) fallback / reference: exact PyTorch ceil_mode semantics
# ----------------------------------------------------------------------------
def _maxpool_ref(x, k, s):
    N, C, H, W = x.shape
    OH = _ceil_pool_out_size(H, k, s)
    OW = _ceil_pool_out_size(W, k, s)
    rows = []
    for oh in range(OH):
        cols = []
        for ow in range(OW):
            h0, h1 = oh * s, min(oh * s + k, H)
            w0, w1 = ow * s, min(ow * s + k, W)
            cols.append(jnp.max(x[:, :, h0:h1, w0:w1], axis=(2, 3)))
        rows.append(jnp.stack(cols, axis=-1))
    return jnp.stack(rows, axis=-2)


# ----------------------------------------------------------------------------
# wrapper
# ----------------------------------------------------------------------------
_PALLAS_MIN_CHANNELS = 128   # below this a Pallas launch cannot beat fused XLA


def maxpool2d_ceil(x, kernel_size=3, stride=None, *,
                   lane_tile=512, force_pallas=False):
    """nn.MaxPool2d(kernel_size, ceil_mode=True) forward. x: (N, C, H, W)."""
    if stride is None:
        stride = kernel_size
    k, s = kernel_size, stride
    N, C, H, W = x.shape
    OH = _ceil_pool_out_size(H, k, s)
    OW = _ceil_pool_out_size(W, k, s)
    NC = N * C

    if NC < _PALLAS_MIN_CHANNELS and not force_pallas:
        # Tiny workload: kernel-launch + DMA overhead dwarfs the compute.
        return _maxpool_ref(x, k, s)

    # Lane-dense layout: channels on the lane (last) axis.
    xf = x.reshape(NC, H * W).T                            # (H*W, NC)

    nc_pad = _round_up(NC, 128)
    tile = min(lane_tile, nc_pad)                          # multiple of 128
    nc_pad = _round_up(nc_pad, tile)                       # divisible by tile
    if nc_pad != NC:
        # Padded lanes are discarded after the call; the pad value is irrelevant.
        xf = jnp.pad(xf, ((0, 0), (0, nc_pad - NC)))

    kernel = _make_maxpool_kernel(H, W, k, s, OH, OW)

    out = pl.pallas_call(
        kernel,
        out_shape=jax.ShapeDtypeStruct((OH * OW, nc_pad), x.dtype),
        grid=(nc_pad // tile,),
        in_specs=[pl.BlockSpec((H * W, tile), lambda i: (0, i))],
        out_specs=pl.BlockSpec((OH * OW, tile), lambda i: (0, i)),
        compiler_params=pltpu.CompilerParams(
            dimension_semantics=("parallel",),             # shard NC tiles (2 TCs on v7x)
        ),
    )(xf)

    out = out[:, :NC].T.reshape(N, C, OH, OW)
    return out


# ----------------------------------------------------------------------------
# demo / self-test
# ----------------------------------------------------------------------------
if __name__ == "__main__":
    key = jax.random.PRNGKey(0)
    k_small, k_large = jax.random.split(key)

    # (a) Exact shape the PyTorch script implies: reshape(-1, 1, 5, 5), batch 2.
    #     NC=2 is tiny -> the wrapper dispatches to the fused-XLA path.
    x_small = jax.random.normal(k_small, (2 * 1 * 5 * 5,), dtype=jnp.float32)
    x_small = x_small.reshape(-1, 1, 5, 5)                 # (2, 1, 5, 5) NCHW
    y_small = jax.block_until_ready(maxpool2d_ceil(x_small, kernel_size=3))
    assert y_small.shape == (2, 1, 2, 2), y_small.shape
    assert jnp.allclose(y_small, _maxpool_ref(x_small, 3, 3))

    #     Also force the Pallas path on the tiny case to verify the kernel and
    #     its lane-padding logic end-to-end.
    y_small_pl = jax.block_until_ready(
        maxpool2d_ceil(x_small, kernel_size=3, force_pallas=True))
    assert jnp.allclose(y_small_pl, y_small)

    # (b) Larger channel count that actually exercises the intended Pallas
    #     regime: lane-dense layout, lane padding, multi-tile parallel grid
    #     (NC=1200 -> padded to 1536 -> 3 tiles of 512 lanes).
    x_large = jax.random.normal(k_large, (4, 300, 5, 5), dtype=jnp.float32)
    y_large = jax.block_until_ready(maxpool2d_ceil(x_large, kernel_size=3))
    assert y_large.shape == (4, 300, 2, 2), y_large.shape
    assert jnp.allclose(y_large, _maxpool_ref(x_large, 3, 3))

    print("KERNEL_OK")
</pallas_src>

<mosaic_0001>
module attributes {stable_mosaic.version = 11 : i64} {
  func.func @kernel(%arg0: i32, %arg1: memref<25x128xf32, #tpu.memory_space<vmem>>, %arg2: memref<4x128xf32, #tpu.memory_space<vmem>>) attributes {dimension_semantics = [#tpu.dimension_semantics<parallel>], iteration_bounds = array<i64: 1>, scalar_prefetch = 0 : i64, scratch_operands = 0 : i64, tpu.core_type = #tpu.core_type<tc>, window_params = [{transform_indices = @transform_0, window_bounds = array<i64: 25, 128>}, {transform_indices = @transform_1, window_bounds = array<i64: 4, 128>}]} {
    %c0 = arith.constant 0 : index
    %c0_0 = arith.constant 0 : index
    %0 = vector.load %arg1[%c0, %c0_0] : memref<25x128xf32, #tpu.memory_space<vmem>>, vector<1x128xf32>
    %c1 = arith.constant 1 : index
    %c0_1 = arith.constant 0 : index
    %1 = vector.load %arg1[%c1, %c0_1] : memref<25x128xf32, #tpu.memory_space<vmem>>, vector<1x128xf32>
    %2 = arith.maximumf %0, %1 : vector<1x128xf32>
    %c2 = arith.constant 2 : index
    %c0_2 = arith.constant 0 : index
    %3 = vector.load %arg1[%c2, %c0_2] : memref<25x128xf32, #tpu.memory_space<vmem>>, vector<1x128xf32>
    %4 = arith.maximumf %2, %3 : vector<1x128xf32>
    %c5 = arith.constant 5 : index
    %c0_3 = arith.constant 0 : index
    %5 = vector.load %arg1[%c5, %c0_3] : memref<25x128xf32, #tpu.memory_space<vmem>>, vector<1x128xf32>
    %6 = arith.maximumf %4, %5 : vector<1x128xf32>
    %c6 = arith.constant 6 : index
    %c0_4 = arith.constant 0 : index
    %7 = vector.load %arg1[%c6, %c0_4] : memref<25x128xf32, #tpu.memory_space<vmem>>, vector<1x128xf32>
    %8 = arith.maximumf %6, %7 : vector<1x128xf32>
    %c7 = arith.constant 7 : index
    %c0_5 = arith.constant 0 : index
    %9 = vector.load %arg1[%c7, %c0_5] : memref<25x128xf32, #tpu.memory_space<vmem>>, vector<1x128xf32>
    %10 = arith.maximumf %8, %9 : vector<1x128xf32>
    %c10 = arith.constant 10 : index
    %c0_6 = arith.constant 0 : index
    %11 = vector.load %arg1[%c10, %c0_6] : memref<25x128xf32, #tpu.memory_space<vmem>>, vector<1x128xf32>
    %12 = arith.maximumf %10, %11 : vector<1x128xf32>
    %c11 = arith.constant 11 : index
    %c0_7 = arith.constant 0 : index
    %13 = vector.load %arg1[%c11, %c0_7] : memref<25x128xf32, #tpu.memory_space<vmem>>, vector<1x128xf32>
    %14 = arith.maximumf %12, %13 : vector<1x128xf32>
    %c12 = arith.constant 12 : index
    %c0_8 = arith.constant 0 : index
    %15 = vector.load %arg1[%c12, %c0_8] : memref<25x128xf32, #tpu.memory_space<vmem>>, vector<1x128xf32>
    %16 = arith.maximumf %14, %15 : vector<1x128xf32>
    %c0_9 = arith.constant 0 : index
    %c0_10 = arith.constant 0 : index
    %17 = vector.load %arg2[%c0_9, %c0_10] : memref<4x128xf32, #tpu.memory_space<vmem>>, vector<1x128xf32>
    tpu.vector_store %arg2[%c0_9, %c0_10], %16 {strides = array<i32>} : memref<4x128xf32, #tpu.memory_space<vmem>>, vector<1x128xf32>,
    %c3 = arith.constant 3 : index
    %c0_11 = arith.constant 0 : index
    %18 = vector.load %arg1[%c3, %c0_11] : memref<25x128xf32, #tpu.memory_space<vmem>>, vector<1x128xf32>
    %c4 = arith.constant 4 : index
    %c0_12 = arith.constant 0 : index
    %19 = vector.load %arg1[%c4, %c0_12] : memref<25x128xf32, #tpu.memory_space<vmem>>, vector<1x128xf32>
    %20 = arith.maximumf %18, %19 : vector<1x128xf32>
    %c8 = arith.constant 8 : index
    %c0_13 = arith.constant 0 : index
    %21 = vector.load %arg1[%c8, %c0_13] : memref<25x128xf32, #tpu.memory_space<vmem>>, vector<1x128xf32>
    %22 = arith.maximumf %20, %21 : vector<1x128xf32>
    %c9 = arith.constant 9 : index
    %c0_14 = arith.constant 0 : index
    %23 = vector.load %arg1[%c9, %c0_14] : memref<25x128xf32, #tpu.memory_space<vmem>>, vector<1x128xf32>
    %24 = arith.maximumf %22, %23 : vector<1x128xf32>
    %c13 = arith.constant 13 : index
    %c0_15 = arith.constant 0 : index
    %25 = vector.load %arg1[%c13, %c0_15] : memref<25x128xf32, #tpu.memory_space<vmem>>, vector<1x128xf32>
    %26 = arith.maximumf %24, %25 : vector<1x128xf32>
    %c14 = arith.constant 14 : index
    %c0_16 = arith.constant 0 : index
    %27 = vector.load %arg1[%c14, %c0_16] : memref<25x128xf32, #tpu.memory_space<vmem>>, vector<1x128xf32>
    %28 = arith.maximumf %26, %27 : vector<1x128xf32>
    %c1_17 = arith.constant 1 : index
    %c0_18 = arith.constant 0 : index
    %29 = vector.load %arg2[%c1_17, %c0_18] : memref<4x128xf32, #tpu.memory_space<vmem>>, vector<1x128xf32>
    tpu.vector_store %arg2[%c1_17, %c0_18], %28 {strides = array<i32>} : memref<4x128xf32, #tpu.memory_space<vmem>>, vector<1x128xf32>,
    %c15 = arith.constant 15 : index
    %c0_19 = arith.constant 0 : index
    %30 = vector.load %arg1[%c15, %c0_19] : memref<25x128xf32, #tpu.memory_space<vmem>>, vector<1x128xf32>
    %c16 = arith.constant 16 : index
    %c0_20 = arith.constant 0 : index
    %31 = vector.load %arg1[%c16, %c0_20] : memref<25x128xf32, #tpu.memory_space<vmem>>, vector<1x128xf32>
    %32 = arith.maximumf %30, %31 : vector<1x128xf32>
    %c17 = arith.constant 17 : index
    %c0_21 = arith.constant 0 : index
    %33 = vector.load %arg1[%c17, %c0_21] : memref<25x128xf32, #tpu.memory_space<vmem>>, vector<1x128xf32>
    %34 = arith.maximumf %32, %33 : vector<1x128xf32>
    %c20 = arith.constant 20 : index
    %c0_22 = arith.constant 0 : index
    %35 = vector.load %arg1[%c20, %c0_22] : memref<25x128xf32, #tpu.memory_space<vmem>>, vector<1x128xf32>
    %36 = arith.maximumf %34, %35 : vector<1x128xf32>
    %c21 = arith.constant 21 : index
    %c0_23 = arith.constant 0 : index
    %37 = vector.load %arg1[%c21, %c0_23] : memref<25x128xf32, #tpu.memory_space<vmem>>, vector<1x128xf32>
    %38 = arith.maximumf %36, %37 : vector<1x128xf32>
    %c22 = arith.constant 22 : index
    %c0_24 = arith.constant 0 : index
    %39 = vector.load %arg1[%c22, %c0_24] : memref<25x128xf32, #tpu.memory_space<vmem>>, vector<1x128xf32>
    %40 = arith.maximumf %38, %39 : vector<1x128xf32>
    %c2_25 = arith.constant 2 : index
    %c0_26 = arith.constant 0 : index
    %41 = vector.load %arg2[%c2_25, %c0_26] : memref<4x128xf32, #tpu.memory_space<vmem>>, vector<1x128xf32>
    tpu.vector_store %arg2[%c2_25, %c0_26], %40 {strides = array<i32>} : memref<4x128xf32, #tpu.memory_space<vmem>>, vector<1x128xf32>,
    %c18 = arith.constant 18 : index
    %c0_27 = arith.constant 0 : index
    %42 = vector.load %arg1[%c18, %c0_27] : memref<25x128xf32, #tpu.memory_space<vmem>>, vector<1x128xf32>
    %c19 = arith.constant 19 : index
    %c0_28 = arith.constant 0 : index
    %43 = vector.load %arg1[%c19, %c0_28] : memref<25x128xf32, #tpu.memory_space<vmem>>, vector<1x128xf32>
    %44 = arith.maximumf %42, %43 : vector<1x128xf32>
    %c23 = arith.constant 23 : index
    %c0_29 = arith.constant 0 : index
    %45 = vector.load %arg1[%c23, %c0_29] : memref<25x128xf32, #tpu.memory_space<vmem>>, vector<1x128xf32>
    %46 = arith.maximumf %44, %45 : vector<1x128xf32>
    %c24 = arith.constant 24 : index
    %c0_30 = arith.constant 0 : index
    %47 = vector.load %arg1[%c24, %c0_30] : memref<25x128xf32, #tpu.memory_space<vmem>>, vector<1x128xf32>
    %48 = arith.maximumf %46, %47 : vector<1x128xf32>
    %c3_31 = arith.constant 3 : index
    %c0_32 = arith.constant 0 : index
    %49 = vector.load %arg2[%c3_31, %c0_32] : memref<4x128xf32, #tpu.memory_space<vmem>>, vector<1x128xf32>
    tpu.vector_store %arg2[%c3_31, %c0_32], %48 {strides = array<i32>} : memref<4x128xf32, #tpu.memory_space<vmem>>, vector<1x128xf32>,
    return
  }
  func.func @transform_0(%arg0: i32) -> (i32, i32) {
    %c0_i32 = arith.constant 0 : i32
    %c0_i32_0 = arith.constant 0 : i32
    return %c0_i32, %arg0 : i32, i32
  }
  func.func @transform_1(%arg0: i32) -> (i32, i32) {
    %c0_i32 = arith.constant 0 : i32
    %c0_i32_0 = arith.constant 0 : i32
    return %c0_i32, %arg0 : i32, i32
  }
}

</mosaic_0001>

<llo_original>
// kernel: tpu_custom_call.1
$region0: #{tpu_custom_call.1}
  #allocation0 [shape = 'u32[]', space=smem, size = 0x4, offset = 0x4, fixed_abs, tag = 'smem constant byte address 0x4 - core index']
  #allocation1 [shape = 'u32[72,128]{1,0:T(1,128)}', space=vmem, size = 0x9000, scoped, tag = 'internal scratch']
  %s0 = inlined_call_operand.hbm [shape: f32[25,128], index: 0, kind: input, shape index: {}]
  %s1 = inlined_call_operand.hbm [shape: f32[4,128], index: 1, kind: output, shape index: {}]
  %s2 = sld [smem:[#allocation0]]
  $region18: #{tpu_custom_call.1} parent=0
    _
  %s4 = ssub.s32 1, %s2
  %s5 = scalar_select 0, %s4, %s2
  $region1: #{tpu_custom_call.1} parent=0
    #allocation2 [shape = 'u8[16384]{0}', space=vmem, size = 0x4000, scoped, tag = 'input window, operand 0, single buffered']
    #allocation3 [shape = 's32[1]{0}', space=sflag, size = 0x4, scoped, tag = 'scoped memory for tpu_custom_call.1']
    #allocation4 [shape = 's32[1]{0}', space=sflag, size = 0x4, scoped, tag = 'scoped memory for tpu_custom_call.1']
    #allocation5 [shape = 'u8[2048]{0}', space=vmem, size = 0x800, scoped, tag = 'output window, operand 0, single buffered']
    %6 = vsyncpa [#allocation3], 0
    %7 = vsyncpa [#allocation4], 0
    // Predicated region
    $region2: #{tpu_custom_call.1} parent=1 // pred_check
      _
    $region3: #{tpu_custom_call.1} parent=1 // pred_check_branch
      %9 = sbr.rel (0) target = $region5
    $region4: #{tpu_custom_call.1} parent=1 // pred_region
      %11 = vsyncadd [#allocation3], 0
      %s12 = sshll.u32 %s0, 4
      %s13 = int_to_ptr.hbm [resolvable:$true] %s12
      %s14 = sshll.u32 [#allocation2], 4
      %s15 = int_to_ptr.vmem [resolvable:$true] %s14
      %20 = dma.hbm_to_vmem [thread:$0]  %s13, 512, %s15, [#allocation3], 128, 128, 8
    $region5: #{tpu_custom_call.1} parent=1 // pred_fallthru
      _
    // Predicated region
    $region6: #{tpu_custom_call.1} parent=1 // pred_check
      _
    $region7: #{tpu_custom_call.1} parent=1 // pred_check_branch
      %22 = sbr.rel (0) target = $region9
    $region8: #{tpu_custom_call.1} parent=1 // pred_region
      %24 = dma.done [#allocation3], 512
    $region9: #{tpu_custom_call.1} parent=1 // pred_fallthru
      _
    %v25 = vld [vmem:[#allocation2] sm:$0x1]
    %v26 = vld [vmem:[#allocation2 + $0x1] sm:$0x1]
    %v27 = vmax.f32 %v25, %v26
    %v28 = vld [vmem:[#allocation2 + $0x2] sm:$0x1]
    %v29 = vmax.f32 %v27, %v28
    %v30 = vld [vmem:[#allocation2 + $0x5] sm:$0x1]
    %v31 = vmax.f32 %v29, %v30
    %v32 = vld [vmem:[#allocation2 + $0x6] sm:$0x1]
    %v33 = vmax.f32 %v31, %v32
    %v34 = vld [vmem:[#allocation2 + $0x7] sm:$0x1]
    %v35 = vmax.f32 %v33, %v34
    %v36 = vld [vmem:[#allocation2 + $0xa] sm:$0x1]
    %v37 = vmax.f32 %v35, %v36
    %v38 = vld [vmem:[#allocation2 + $0xb] sm:$0x1]
    %v39 = vmax.f32 %v37, %v38
    %v40 = vld [vmem:[#allocation2 + $0xc] sm:$0x1]
    %v41 = vmax.f32 %v39, %v40
    %42 = vst [vmem:[#allocation5] sm:$0x1] %v41
    %v43 = vld [vmem:[#allocation2 + $0x3] sm:$0x1]
    %v44 = vld [vmem:[#allocation2 + $0x4] sm:$0x1]
    %v45 = vmax.f32 %v43, %v44
    %v46 = vld [vmem:[#allocation2 + $0x8] sm:$0x1]
    %v47 = vmax.f32 %v45, %v46
    %v48 = vld [vmem:[#allocation2 + $0x9] sm:$0x1]
    %v49 = vmax.f32 %v47, %v48
    %v50 = vld [vmem:[#allocation2 + $0xd] sm:$0x1]
    %v51 = vmax.f32 %v49, %v50
    %v52 = vld [vmem:[#allocation2 + $0xe] sm:$0x1]
    %v53 = vmax.f32 %v51, %v52
    %54 = vst [vmem:[#allocation5 + $0x1] sm:$0x1] %v53
    %v55 = vld [vmem:[#allocation2 + $0xf] sm:$0x1]
    %v56 = vld [vmem:[#allocation2 + $0x10] sm:$0x1]
    %v57 = vmax.f32 %v55, %v56
    %v58 = vld [vmem:[#allocation2 + $0x11] sm:$0x1]
    %v59 = vmax.f32 %v57, %v58
    %v60 = vld [vmem:[#allocation2 + $0x14] sm:$0x1]
    %v61 = vmax.f32 %v59, %v60
    %v62 = vld [vmem:[#allocation2 + $0x15] sm:$0x1]
    %v63 = vmax.f32 %v61, %v62
    %v64 = vld [vmem:[#allocation2 + $0x16] sm:$0x1]
    %v65 = vmax.f32 %v63, %v64
    %66 = vst [vmem:[#allocation5 + $0x2] sm:$0x1] %v65
    %v67 = vld [vmem:[#allocation2 + $0x12] sm:$0x1]
    %v68 = vld [vmem:[#allocation2 + $0x13] sm:$0x1]
    %v69 = vmax.f32 %v67, %v68
    %v70 = vld [vmem:[#allocation2 + $0x17] sm:$0x1]
    %v71 = vmax.f32 %v69, %v70
    %v72 = vld [vmem:[#allocation2 + $0x18] sm:$0x1]
    %v73 = vmax.f32 %v71, %v72
    %74 = vst [vmem:[#allocation5 + $0x3] sm:$0x1] %v73
    // Predicated region
    $region10: #{tpu_custom_call.1} parent=1 // pred_check
      _
    $region11: #{tpu_custom_call.1} parent=1 // pred_check_branch
      %76 = sbr.rel (0) target = $region13
    $region12: #{tpu_custom_call.1} parent=1 // pred_region
      %78 = vsyncadd [#allocation4], 0
      %s80 = sshll.u32 [#allocation5], 4
      %s81 = int_to_ptr.vmem [resolvable:$true] %s80
      %s82 = sshll.u32 %s1, 4
      %s83 = int_to_ptr.hbm [resolvable:$true] %s82
      %85 = dma.vmem_to_hbm [thread:$0]  %s81, 64, %s83, [#allocation4]
    $region13: #{tpu_custom_call.1} parent=1 // pred_fallthru
      _
    // Predicated region
    $region14: #{tpu_custom_call.1} parent=1 // pred_check
      _
    $region15: #{tpu_custom_call.1} parent=1 // pred_check_branch
      %87 = sbr.rel (0) target = $region17
    $region16: #{tpu_custom_call.1} parent=1 // pred_region
      %89 = dma.done [#allocation4], 64
    $region17: #{tpu_custom_call.1} parent=1 // pred_fallthru
      _
    %90 = vsyncpa [#allocation3], 1
    %91 = vsyncpa [#allocation4], 1

</llo_original>
